<compile_context>
chip_gen: v7x
topology: tpu7x:2x2x1
jax: 0.10.0
libtpu: 0.0.40
codegen_flags: <defaults>
</compile_context>

<pallas_src>
import jax
import jax.numpy as jnp
from jax.experimental import pallas as pl

# Problem sizes implied by the forward (small image classifier).
N, CIN, H, W = 2, 4, 16, 16          # batch, in-channels, spatial
COUT, NC = 8, 10                     # conv out-channels, num classes
KH = KW = 3
PAD = 1
HW = H * W                           # 256 spatial positions per image (2 lane-tiles)
NHW = N * HW                         # 512 lanes: batch*spatial
KTAPS = KH * KW                      # 9
KDIM = KTAPS * CIN                   # 36 contraction size (Mosaic pads internally)
LANE = 128                           # lane-dense logits slab width
OUT_ROWS = 8                         # full (8, 128) output tile


def _fused_cls_kernel(patch_ref, wmat_ref, bconv_ref, wfc_ref, bfc_ref, out_ref):
    """conv3x3(same) + ReLU + global-avg-pool + linear head, whole batch.

    patch_ref: (KDIM, NHW)        im2col slab: rows (kh,kw,ci), lanes n*HW+h*W+w
    wmat_ref:  (COUT, KDIM)       conv weights flattened in the same row order
    bconv_ref: (COUT, 1)
    wfc_ref:   (COUT, LANE)       head weights, lane-padded (cols >= NC are 0)
    bfc_ref:   (1, LANE)          head bias, lane-padded
    out_ref:   (OUT_ROWS, LANE)   full-tile logits slab (rows >= N are 0)
    """
    # Conv as ONE MXU matmul -> dense (COUT, NHW) = (8, 512); bias + ReLU on VPU.
    acc = jnp.dot(wmat_ref[...], patch_ref[...],
                  preferred_element_type=jnp.float32,
                  precision=jax.lax.Precision.HIGHEST)
    acc = jnp.maximum(acc + bconv_ref[...], 0.0)

    # Per-image global average pool (lane-aligned 256-wide slices, XLU reduce)
    # + linear head on the VPU: logits[n, :] = sum_k pooled[k] * wfc[k, :] + b.
    inv_hw = jnp.float32(1.0 / HW)
    wfc = wfc_ref[...]
    bfc = bfc_ref[...]
    row_ids = jax.lax.broadcasted_iota(jnp.int32, (OUT_ROWS, LANE), 0)
    slab = jnp.zeros((OUT_ROWS, LANE), jnp.float32)
    for n in range(N):                                        # N = 2, unrolled
        pooled = jnp.sum(acc[:, n * HW:(n + 1) * HW], axis=1, keepdims=True) * inv_hw
        logits_n = jnp.sum(pooled * wfc, axis=0, keepdims=True) + bfc  # (1, LANE)
        slab = jnp.where(row_ids == n, logits_n, slab)
    # Single unmasked (8, 128) full-tile store.
    out_ref[...] = slab


def prepare_params(wconv, bconv, wfc, bfc):
    """One-time parameter preparation (hoisted out of the forward path)."""
    # (COUT, CIN, KH, KW) -> (COUT, KH*KW*CIN), row order (kh, kw, ci).
    w_mat = jnp.transpose(wconv, (0, 2, 3, 1)).reshape(COUT, KDIM)
    bconv_col = bconv.reshape(COUT, 1)
    wfc_pad = jnp.zeros((COUT, LANE), jnp.float32).at[:, :NC].set(wfc)
    bfc_pad = jnp.zeros((1, LANE), jnp.float32).at[0, :NC].set(bfc)
    return w_mat, bconv_col, wfc_pad, bfc_pad


def pallas_cls_forward(x_nchw, prepared):
    """Runs the fused classifier kernel. x_nchw: (N, CIN, H, W) float32."""
    w_mat, bconv_col, wfc_pad, bfc_pad = prepared

    # im2col in XLA (fused into the surrounding jit): rows ordered (kh, kw, ci),
    # lanes ordered n*HW + h*W + w, matching the flattened conv weights.
    xpad = jnp.pad(x_nchw, ((0, 0), (0, 0), (PAD, PAD), (PAD, PAD)))
    taps = [xpad[:, :, kh:kh + H, kw:kw + W]                  # (N, CIN, H, W) each
            for kh in range(KH) for kw in range(KW)]
    patch = jnp.stack(taps, axis=0)                           # (9, N, CIN, H, W)
    patch = jnp.transpose(patch, (0, 2, 1, 3, 4)).reshape(KDIM, NHW)

    out = pl.pallas_call(
        _fused_cls_kernel,
        out_shape=jax.ShapeDtypeStruct((OUT_ROWS, LANE), jnp.float32),
    )(patch, w_mat, bconv_col, wfc_pad, bfc_pad)
    return out[:N, :NC]


def inner_model(inputs, prepared_params):
    """Synthetic stand-in for `self.model`: dict-in / dict-out classifier."""
    return {"cls": pallas_cls_forward(inputs["image"], prepared_params)}


@jax.jit
def wrapped_model_forward(x, prepared_params):
    """Exact semantics of WrappedModel.forward: model({'image': x})['cls']."""
    return inner_model({"image": x}, prepared_params)["cls"]


def _reference_forward(x_nchw, wconv, bconv, wfc, bfc):
    """Pure-JAX reference (mirrors torch conv2d + relu + GAP + linear)."""
    y = jax.lax.conv_general_dilated(
        x_nchw, wconv, window_strides=(1, 1),
        padding=((PAD, PAD), (PAD, PAD)),
        dimension_numbers=("NCHW", "OIHW", "NCHW"),
        precision=jax.lax.Precision.HIGHEST)
    y = jnp.maximum(y + bconv[None, :, None, None], 0.0)
    pooled = jnp.mean(y, axis=(2, 3))
    return jnp.dot(pooled, wfc, precision=jax.lax.Precision.HIGHEST) + bfc


if __name__ == "__main__":
    key = jax.random.PRNGKey(0)
    kx, kwc, kbc, kwf, kbf = jax.random.split(key, 5)

    x = jax.random.normal(kx, (N, CIN, H, W), dtype=jnp.float32)
    # Deterministic synthetic parameters (shapes follow the implied classifier).
    wconv = 0.1 * jax.random.normal(kwc, (COUT, CIN, KH, KW), dtype=jnp.float32)
    bconv = 0.1 * jax.random.normal(kbc, (COUT,), dtype=jnp.float32)
    wfc = 0.1 * jax.random.normal(kwf, (COUT, NC), dtype=jnp.float32)
    bfc = 0.1 * jax.random.normal(kbf, (NC,), dtype=jnp.float32)

    prepared = prepare_params(wconv, bconv, wfc, bfc)        # once, at init

    cls = wrapped_model_forward(x, prepared)
    cls = jax.block_until_ready(cls)

    ref = _reference_forward(x, wconv, bconv, wfc, bfc)
    assert cls.shape == (N, NC), cls.shape
    assert jnp.allclose(cls, ref, atol=1e-4, rtol=1e-4), (cls, ref)

    print("KERNEL_OK")
</pallas_src>

<mosaic_0001>
module attributes {stable_mosaic.version = 11 : i64} {
  func.func @_fused_cls_kernel(%arg0: memref<36x512xf32, #tpu.memory_space<vmem>>, %arg1: memref<8x36xf32, #tpu.memory_space<vmem>>, %arg2: memref<8x1xf32, #tpu.memory_space<vmem>>, %arg3: memref<8x128xf32, #tpu.memory_space<vmem>>, %arg4: memref<1x128xf32, #tpu.memory_space<vmem>>, %arg5: memref<8x128xf32, #tpu.memory_space<vmem>>) attributes {dimension_semantics = [], scalar_prefetch = 0 : i64, scratch_operands = 0 : i64, tpu.core_type = #tpu.core_type<tc>} {
    %c0 = arith.constant 0 : index
    %c0_0 = arith.constant 0 : index
    %0 = vector.load %arg1[%c0, %c0_0] : memref<8x36xf32, #tpu.memory_space<vmem>>, vector<8x36xf32>
    %c0_1 = arith.constant 0 : index
    %c0_2 = arith.constant 0 : index
    %1 = vector.load %arg0[%c0_1, %c0_2] : memref<36x512xf32, #tpu.memory_space<vmem>>, vector<36x512xf32>
    %cst = arith.constant dense<0.000000e+00> : vector<8x512xf32>
    %2 = tpu.matmul %0, %1, %cst {dimension_numbers = #tpu.dot_dimension_numbers<[1], [0], [0], [1], [0, 0, 1, 1], [], []>, precision = #tpu.contract_precision<fp32>} : vector<8x36xf32>, vector<36x512xf32>, vector<8x512xf32> -> vector<8x512xf32>
    %c0_3 = arith.constant 0 : index
    %c0_4 = arith.constant 0 : index
    %3 = vector.load %arg2[%c0_3, %c0_4] : memref<8x1xf32, #tpu.memory_space<vmem>>, vector<8x1xf32>
    %4 = vector.broadcast %3 : vector<8x1xf32> to vector<8x512xf32>
    %5 = arith.addf %2, %4 : vector<8x512xf32>
    %cst_5 = arith.constant 0.000000e+00 : f32
    %6 = vector.broadcast %cst_5 : f32 to vector<8x512xf32>
    %7 = arith.maximumf %5, %6 : vector<8x512xf32>
    %c0_6 = arith.constant 0 : index
    %c0_7 = arith.constant 0 : index
    %8 = vector.load %arg3[%c0_6, %c0_7] : memref<8x128xf32, #tpu.memory_space<vmem>>, vector<8x128xf32>
    %c0_8 = arith.constant 0 : index
    %c0_9 = arith.constant 0 : index
    %9 = vector.load %arg4[%c0_8, %c0_9] : memref<1x128xf32, #tpu.memory_space<vmem>>, vector<1x128xf32>
    %10 = tpu.iota {dimensions = array<i32: 0>} : vector<8x128xi32>
    %cst_10 = arith.constant 0.000000e+00 : f32
    %11 = vector.broadcast %cst_10 : f32 to vector<8x128xf32>
    %12 = vector.extract_strided_slice %7 {offsets = [0, 0], sizes = [8, 256], strides = [1, 1]} : vector<8x512xf32> to vector<8x256xf32>
    %cst_11 = arith.constant dense<0.000000e+00> : vector<8xf32>
    %13 = vector.multi_reduction <add>, %12, %cst_11 [1] : vector<8x256xf32> to vector<8xf32>
    %14 = vector.shape_cast %13 : vector<8xf32> to vector<8x1xf32>
    %cst_12 = arith.constant 3.906250e-03 : f32
    %15 = vector.broadcast %cst_12 : f32 to vector<8x1xf32>
    %16 = arith.mulf %14, %15 : vector<8x1xf32>
    %17 = vector.broadcast %16 : vector<8x1xf32> to vector<8x128xf32>
    %18 = arith.mulf %17, %8 : vector<8x128xf32>
    %cst_13 = arith.constant dense<0.000000e+00> : vector<128xf32>
    %19 = vector.multi_reduction <add>, %18, %cst_13 [0] : vector<8x128xf32> to vector<128xf32>
    %20 = vector.shape_cast %19 : vector<128xf32> to vector<1x128xf32>
    %21 = arith.addf %20, %9 : vector<1x128xf32>
    %c0_i32 = arith.constant 0 : i32
    %22 = vector.broadcast %c0_i32 : i32 to vector<8x128xi32>
    %23 = arith.cmpi eq, %10, %22 : vector<8x128xi32>
    %24 = vector.shape_cast %21 : vector<1x128xf32> to vector<1x128xf32>
    %25 = vector.broadcast %24 : vector<1x128xf32> to vector<8x128xf32>
    %26 = arith.select %23, %25, %11 : vector<8x128xi1>, vector<8x128xf32>
    %27 = vector.extract_strided_slice %7 {offsets = [0, 256], sizes = [8, 256], strides = [1, 1]} : vector<8x512xf32> to vector<8x256xf32>
    %cst_14 = arith.constant dense<0.000000e+00> : vector<8xf32>
    %28 = vector.multi_reduction <add>, %27, %cst_14 [1] : vector<8x256xf32> to vector<8xf32>
    %29 = vector.shape_cast %28 : vector<8xf32> to vector<8x1xf32>
    %cst_15 = arith.constant 3.906250e-03 : f32
    %30 = vector.broadcast %cst_15 : f32 to vector<8x1xf32>
    %31 = arith.mulf %29, %30 : vector<8x1xf32>
    %32 = vector.broadcast %31 : vector<8x1xf32> to vector<8x128xf32>
    %33 = arith.mulf %32, %8 : vector<8x128xf32>
    %cst_16 = arith.constant dense<0.000000e+00> : vector<128xf32>
    %34 = vector.multi_reduction <add>, %33, %cst_16 [0] : vector<8x128xf32> to vector<128xf32>
    %35 = vector.shape_cast %34 : vector<128xf32> to vector<1x128xf32>
    %36 = arith.addf %35, %9 : vector<1x128xf32>
    %c1_i32 = arith.constant 1 : i32
    %37 = vector.broadcast %c1_i32 : i32 to vector<8x128xi32>
    %38 = arith.cmpi eq, %10, %37 : vector<8x128xi32>
    %39 = vector.shape_cast %36 : vector<1x128xf32> to vector<1x128xf32>
    %40 = vector.broadcast %39 : vector<1x128xf32> to vector<8x128xf32>
    %41 = arith.select %38, %40, %26 : vector<8x128xi1>, vector<8x128xf32>
    %c0_17 = arith.constant 0 : index
    %c0_18 = arith.constant 0 : index
    %42 = vector.load %arg5[%c0_17, %c0_18] : memref<8x128xf32, #tpu.memory_space<vmem>>, vector<8x128xf32>
    tpu.vector_store %arg5[%c0_17, %c0_18], %41 {strides = array<i32>} : memref<8x128xf32, #tpu.memory_space<vmem>>, vector<8x128xf32>,
    return
  }
}

</mosaic_0001>

<llo_original>
// kernel: wrapped_model_forward.1
$region0: #{wrapped_model_forward.1}
  #allocation0 [shape = 'u32[]', space=smem, size = 0x4, offset = 0x4, fixed_abs, tag = 'smem constant byte address 0x4 - core index']
  #allocation1 [shape = 'u32[144,128]{1,0:T(1,128)}', space=vmem, size = 0x12000, scoped, tag = 'internal scratch']
  %s0 = inlined_call_operand.vmem [shape: f32[36,512], index: 0, kind: input, shape index: {}]
  %s1 = inlined_call_operand.vmem [shape: f32[8,36], index: 1, kind: input, shape index: {}]
  %s2 = inlined_call_operand.vmem [shape: f32[8,1], index: 2, kind: input, shape index: {}]
  %s3 = inlined_call_operand.vmem [shape: f32[8,128], index: 3, kind: input, shape index: {}]
  %s4 = inlined_call_operand.vmem [shape: f32[1,128], index: 4, kind: input, shape index: {}]
  %s5 = inlined_call_operand.vmem [shape: f32[8,128], index: 5, kind: output, shape index: {}]
  %s6 = sld [smem:[#allocation0]]
  $region30: #{wrapped_model_forward.1} parent=0
    _
  %s8 = ssub.s32 1, %s6
  %s9 = scalar_select 0, %s8, %s6
  // Predicated region
  $region2: #{wrapped_model_forward.1} parent=0 // pred_check
    _
  $region3: #{wrapped_model_forward.1} parent=0 // pred_check_branch
    %11 = sbr.rel (0) target = $region5
  $region4: #{wrapped_model_forward.1} parent=0 // pred_region
    _
  $region5: #{wrapped_model_forward.1} parent=0 // pred_fallthru
    _
  // Predicated region
  $region6: #{wrapped_model_forward.1} parent=0 // pred_check
    _
  $region7: #{wrapped_model_forward.1} parent=0 // pred_check_branch
    %13 = sbr.rel (0) target = $region9
  $region8: #{wrapped_model_forward.1} parent=0 // pred_region
    _
  $region9: #{wrapped_model_forward.1} parent=0 // pred_fallthru
    _
  // Predicated region
  $region10: #{wrapped_model_forward.1} parent=0 // pred_check
    _
  $region11: #{wrapped_model_forward.1} parent=0 // pred_check_branch
    %15 = sbr.rel (0) target = $region13
  $region12: #{wrapped_model_forward.1} parent=0 // pred_region
    _
  $region13: #{wrapped_model_forward.1} parent=0 // pred_fallthru
    _
  // Predicated region
  $region14: #{wrapped_model_forward.1} parent=0 // pred_check
    _
  $region15: #{wrapped_model_forward.1} parent=0 // pred_check_branch
    %17 = sbr.rel (0) target = $region17
  $region16: #{wrapped_model_forward.1} parent=0 // pred_region
    _
  $region17: #{wrapped_model_forward.1} parent=0 // pred_fallthru
    _
  // Predicated region
  $region18: #{wrapped_model_forward.1} parent=0 // pred_check
    _
  $region19: #{wrapped_model_forward.1} parent=0 // pred_check_branch
    %19 = sbr.rel (0) target = $region21
  $region20: #{wrapped_model_forward.1} parent=0 // pred_region
    _
  $region21: #{wrapped_model_forward.1} parent=0 // pred_fallthru
    _
  %v20 = vld [vmem:[%s1] sm:$0xff]
  %v21 = vld [vmem:[%s0] sm:$0xff]
  %v22 = vld [vmem:[%s0 + $0x8] sm:$0xff]
  %v23 = vld [vmem:[%s0 + $0x10] sm:$0xff]
  %v24 = vld [vmem:[%s0 + $0x18] sm:$0xff]
  %v25 = vld [vmem:[%s0 + $0x20] sm:$0xff]
  %v26 = vld [vmem:[%s0 + $0x28] sm:$0xff]
  %v27 = vld [vmem:[%s0 + $0x30] sm:$0xff]
  %v28 = vld [vmem:[%s0 + $0x38] sm:$0xff]
  %v29 = vld [vmem:[%s0 + $0x40] sm:$0xff]
  %v30 = vld [vmem:[%s0 + $0x48] sm:$0xff]
  %v31 = vld [vmem:[%s0 + $0x50] sm:$0xff]
  %v32 = vld [vmem:[%s0 + $0x58] sm:$0xff]
  %v33 = vld [vmem:[%s0 + $0x60] sm:$0xff]
  %v34 = vld [vmem:[%s0 + $0x68] sm:$0xff]
  %v35 = vld [vmem:[%s0 + $0x70] sm:$0xff]
  %v36 = vld [vmem:[%s0 + $0x78] sm:$0xff]
  %v37 = vld [vmem:[%s0 + $0x80] sm:$0xf]
  %v38 = vld [vmem:[%s0 + $0x88] sm:$0xf]
  %v39 = vld [vmem:[%s0 + $0x90] sm:$0xf]
  %v40 = vld [vmem:[%s0 + $0x98] sm:$0xf]
  %v41 = vld [vmem:[%s2] sm:$0xff]
  %43 = vset.pattern.permute.xlu0 0
  %44 = vperm.xlu0 %43, %v41
  %v45 = vpop.permute.xlu0 %44
  %vm47 = vcmask 293888
  %v49 = vsel %vm47, %v20, 0
  %vm51 = vcmask 1043456
  %v53 = vsel %vm51, %v37, 0
  %v56 = vsel %vm51, %v38, 0
  %v59 = vsel %vm51, %v39, 0
  %v62 = vsel %vm51, %v40, 0
  %v64 = vand.u32 %v22, 4294901760
  %65 = vmatprep.subr.mxu0 %v64
  %v66 = vand.u32 %v21, 4294901760
  %67 = vmatpush1.msra.mxu0 %v66
  %v68 = vand.u32 %v26, 4294901760
  %69 = vmatprep.subr.mxu0 %v68
  %v70 = vand.u32 %v25, 4294901760
  %71 = vmatpush1.msra.mxu0 %v70
  %v72 = vand.u32 %v30, 4294901760
  %73 = vmatprep.subr.mxu0 %v72
  %v74 = vand.u32 %v29, 4294901760
  %75 = vmatpush1.msra.mxu0 %v74
  %v76 = vand.u32 %v34, 4294901760
  %77 = vmatprep.subr.mxu0 %v76
  %v78 = vand.u32 %v33, 4294901760
  %79 = vmatpush1.msra.mxu0 %v78
  %v80 = vand.u32 %v56, 4294901760
  %81 = vmatprep.subr.mxu0 %v80
  %v82 = vand.u32 %v53, 4294901760
  %83 = vmatpush1.msra.mxu0 %v82
  %84 = vmatprep.subr.mxu0 0.0
  %85 = vmatpush1.msra.mxu0 0.0
  %86 = vmatprep.subr.mxu0 0.0
  %87 = vmatpush1.msra.mxu0 0.0
  %88 = vmatprep.subr.mxu0 0.0
  %89 = vmatpush1.msra.mxu0 0.0
  %90 = vmatprep.subr.mxu0 0.0
  %91 = vmatpush1.msra.mxu0 0.0
  %92 = vmatprep.subr.mxu0 0.0
  %93 = vmatpush1.msra.mxu0 0.0
  %94 = vmatprep.subr.mxu0 0.0
  %95 = vmatpush1.msra.mxu0 0.0
  %96 = vmatprep.subr.mxu0 0.0
  %97 = vmatpush1.msra.mxu0 0.0
  %98 = vmatprep.subr.mxu0 0.0
  %99 = vmatpush1.msra.mxu0 0.0
  %100 = vmatprep.subr.mxu0 0.0
  %101 = vmatpush1.msra.mxu0 0.0
  %102 = vmatprep.subr.mxu0 0.0
  %103 = vmatpush1.msra.mxu0 0.0
  %104 = vmatprep.subr.mxu0 0.0
  %105 = vmatpush1.msra.mxu0 0.0
  %106 = vmatprep.subr.mxu0 0.0
  %107 = vmatpush1.msra.mxu0 0.0
  %108 = vmatprep.subr.mxu0 0.0
  %109 = vmatpush1.msra.mxu0 0.0
  %110 = vmatprep.subr.mxu0 0.0
  %111 = vmatpush1.msra.mxu0 0.0
  %112 = vmatprep.subr.mxu0 0.0
  %113 = vmatpush1.msra.mxu0 0.0
  %114 = vmatprep.subr.mxu0 0.0
  %115 = vmatpush1.msra.mxu0 0.0
  %116 = vmatprep.subr.mxu0 0.0
  %117 = vmatpush1.msra.mxu0 0.0
  %118 = vmatprep.subr.mxu0 0.0
  %119 = vmatpush1.msra.mxu0 0.0
  %120 = vmatprep.subr.mxu0 0.0
  %121 = vmatpush1.msra.mxu0 0.0
  %122 = vmatprep.subr.mxu0 0.0
  %123 = vmatpush1.msra.mxu0 0.0
  %124 = vmatprep.subr.mxu0 0.0
  %125 = vmatpush1.msra.mxu0 0.0
  %126 = vmatprep.subr.mxu0 0.0
  %127 = vmatpush1.msra.mxu0 0.0
  %128 = vmatprep.subr.mxu0 0.0
  %129 = vmatpush1.msra.mxu0 0.0
  %130 = vmatprep.subr.mxu0 0.0
  %131 = vmatpush1.msra.mxu0 0.0
  %132 = vmatprep.subr.mxu0 0.0
  %133 = vmatpush1.msra.mxu0 0.0
  %134 = vmatprep.subr.mxu0 0.0
  %135 = vmatpush1.msra.mxu0 0.0
  %136 = vmatprep.subr.mxu0 0.0
  %137 = vmatpush1.msra.mxu0 0.0
  %138 = vmatprep.mubr.f32.mxu0 0.0
  %v139 = vand.u32 %v49, 4294901760
  %v140 = vsub.f32 %v49, %v139
  %v141 = vand.u32 %v140, 4294901760
  %v142 = vsub.f32 %v140, %v141
  %v143 = vand.u32 %v142, 4294901760
  %144 = vmatmul.mubr.f32.gmra.mrb[0].mxu0 %v143
  %v145 = vpop.f32.mrb[0].mxu0
  %v146 = vadd.f32 %v45, %v145
  %v147 = vpop.f32.mrb[0].mxu0
  %v148 = vadd.f32 %v45, %v147
  %149 = vdwg.mxu0
  %v150 = vand.u32 %v22, 4294901760
  %v151 = vsub.f32 %v22, %v150
  %v152 = vand.u32 %v151, 4294901760
  %v153 = vsub.f32 %v151, %v152
  %v154 = vand.u32 %v153, 4294901760
  %155 = vmatprep.subr.mxu0 %v154
  %v156 = vand.u32 %v21, 4294901760
  %v157 = vsub.f32 %v21, %v156
  %v158 = vand.u32 %v157, 4294901760
  %v159 = vsub.f32 %v157, %v158
  %v160 = vand.u32 %v159, 4294901760
  %161 = vmatpush1.msra.mxu0 %v160
  %v162 = vand.u32 %v26, 4294901760
  %v163 = vsub.f32 %v26, %v162
  %v164 = vand.u32 %v163, 4294901760
  %v165 = vsub.f32 %v163, %v164
  %v166 = vand.u32 %v165, 4294901760
  %167 = vmatprep.subr.mxu0 %v166
  %v168 = vand.u32 %v25, 4294901760
  %v169 = vsub.f32 %v25, %v168
  %v170 = vand.u32 %v169, 4294901760
  %v171 = vsub.f32 %v169, %v170
  %v172 = vand.u32 %v171, 4294901760
  %173 = vmatpush1.msra.mxu0 %v172
  %v174 = vand.u32 %v30, 4294901760
  %v175 = vsub.f32 %v30, %v174
  %v176 = vand.u32 %v175, 4294901760
  %v177 = vsub.f32 %v175, %v176
  %v178 = vand.u32 %v177, 4294901760
  %179 = vmatprep.subr.mxu0 %v178
  %v180 = vand.u32 %v29, 4294901760
  %v181 = vsub.f32 %v29, %v180
  %v182 = vand.u32 %v181, 4294901760
  %v183 = vsub.f32 %v181, %v182
  %v184 = vand.u32 %v183, 4294901760
  %185 = vmatpush1.msra.mxu0 %v184
  %v186 = vand.u32 %v34, 4294901760
  %v187 = vsub.f32 %v34, %v186
  %v188 = vand.u32 %v187, 4294901760
  %v189 = vsub.f32 %v187, %v188
  %v190 = vand.u32 %v189, 4294901760
  %191 = vmatprep.subr.mxu0 %v190
  %v192 = vand.u32 %v33, 4294901760
  %v193 = vsub.f32 %v33, %v192
  %v194 = vand.u32 %v193, 4294901760
  %v195 = vsub.f32 %v193, %v194
  %v196 = vand.u32 %v195, 4294901760
  %197 = vmatpush1.msra.mxu0 %v196
  %v198 = vand.u32 %v56, 4294901760
  %v199 = vsub.f32 %v56, %v198
  %v200 = vand.u32 %v199, 4294901760
  %v201 = vsub.f32 %v199, %v200
  %v202 = vand.u32 %v201, 4294901760
  %203 = vmatprep.subr.mxu0 %v202
  %v204 = vand.u32 %v53, 4294901760
  %v205 = vsub.f32 %v53, %v204
  %v206 = vand.u32 %v205, 4294901760
  %v207 = vsub.f32 %v205, %v206
  %v208 = vand.u32 %v207, 4294901760
  %209 = vmatpush1.msra.mxu0 %v208
  %210 = vmatprep.subr.mxu0 0.0
  %211 = vmatpush1.msra.mxu0 0.0
  %212 = vmatprep.subr.mxu0 0.0
  %213 = vmatpush1.msra.mxu0 0.0
  %214 = vmatprep.subr.mxu0 0.0
  %215 = vmatpush1.msra.mxu0 0.0
  %216 = vmatprep.subr.mxu0 0.0
  %217 = vmatpush1.msra.mxu0 0.0
  %218 = vmatprep.subr.mxu0 0.0
  %219 = vmatpush1.msra.mxu0 0.0
  %220 = vmatprep.subr.mxu0 0.0
  %221 = vmatpush1.msra.mxu0 0.0
  %222 = vmatprep.subr.mxu0 0.0
  %223 = vmatpush1.msra.mxu0 0.0
  %224 = vmatprep.subr.mxu0 0.0
  %225 = vmatpush1.msra.mxu0 0.0
  %226 = vmatprep.subr.mxu0 0.0
  %227 = vmatpush1.msra.mxu0 0.0
  %228 = vmatprep.subr.mxu0 0.0
  %229 = vmatpush1.msra.mxu0 0.0
  %230 = vmatprep.subr.mxu0 0.0
  %231 = vmatpush1.msra.mxu0 0.0
  %232 = vmatprep.subr.mxu0 0.0
  %233 = vmatpush1.msra.mxu0 0.0
  %234 = vmatprep.subr.mxu0 0.0
  %235 = vmatpush1.msra.mxu0 0.0
  %236 = vmatprep.subr.mxu0 0.0
  %237 = vmatpush1.msra.mxu0 0.0
  %238 = vmatprep.subr.mxu0 0.0
  %239 = vmatpush1.msra.mxu0 0.0
  %240 = vmatprep.subr.mxu0 0.0
  %241 = vmatpush1.msra.mxu0 0.0
  %242 = vmatprep.subr.mxu0 0.0
  %243 = vmatpush1.msra.mxu0 0.0
  %244 = vmatprep.subr.mxu0 0.0
  %245 = vmatpush1.msra.mxu0 0.0
  %246 = vmatprep.subr.mxu0 0.0
  %247 = vmatpush1.msra.mxu0 0.0
  %248 = vmatprep.subr.mxu0 0.0
  %249 = vmatpush1.msra.mxu0 0.0
  %250 = vmatprep.subr.mxu0 0.0
  %251 = vmatpush1.msra.mxu0 0.0
  %252 = vmatprep.subr.mxu0 0.0
  %253 = vmatpush1.msra.mxu0 0.0
  %254 = vmatprep.subr.mxu0 0.0
  %255 = vmatpush1.msra.mxu0 0.0
  %256 = vmatprep.subr.mxu0 0.0
  %257 = vmatpush1.msra.mxu0 0.0
  %258 = vmatprep.subr.mxu0 0.0
  %259 = vmatpush1.msra.mxu0 0.0
  %260 = vmatprep.subr.mxu0 0.0
  %261 = vmatpush1.msra.mxu0 0.0
  %262 = vmatprep.subr.mxu0 0.0
  %263 = vmatpush1.msra.mxu0 0.0
  %264 = vmatprep.mubr.f32.mxu0 0.0
  %v265 = vand.u32 %v49, 4294901760
  %266 = vmatmul.mubr.f32.gmra.mrb[0].mxu0 %v265
  %v267 = vpop.f32.mrb[0].mxu0
  %v268 = vadd.f32 %v146, %v267
  %v269 = vpop.f32.mrb[0].mxu0
  %v270 = vadd.f32 %v148, %v269
  %271 = vdwg.mxu0
  %v272 = vand.u32 %v22, 4294901760
  %v273 = vsub.f32 %v22, %v272
  %274 = vmatprep.subr.mxu0 %v273
  %v275 = vand.u32 %v21, 4294901760
  %v276 = vsub.f32 %v21, %v275
  %277 = vmatpush1.msra.mxu0 %v276
  %v278 = vand.u32 %v26, 4294901760
  %v279 = vsub.f32 %v26, %v278
  %280 = vmatprep.subr.mxu0 %v279
  %v281 = vand.u32 %v25, 4294901760
  %v282 = vsub.f32 %v25, %v281
  %283 = vmatpush1.msra.mxu0 %v282
  %v284 = vand.u32 %v30, 4294901760
  %v285 = vsub.f32 %v30, %v284
  %286 = vmatprep.subr.mxu0 %v285
  %v287 = vand.u32 %v29, 4294901760
  %v288 = vsub.f32 %v29, %v287
  %289 = vmatpush1.msra.mxu0 %v288
  %v290 = vand.u32 %v34, 4294901760
  %v291 = vsub.f32 %v34, %v290
  %292 = vmatprep.subr.mxu0 %v291
  %v293 = vand.u32 %v33, 4294901760
  %v294 = vsub.f32 %v33, %v293
  %295 = vmatpush1.msra.mxu0 %v294
  %v296 = vand.u32 %v56, 4294901760
  %v297 = vsub.f32 %v56, %v296
  %298 = vmatprep.subr.mxu0 %v297
  %v299 = vand.u32 %v53, 4294901760
  %v300 = vsub.f32 %v53, %v299
  %301 = vmatpush1.msra.mxu0 %v300
  %302 = vmatprep.subr.mxu0 0.0
  %303 = vmatpush1.msra.mxu0 0.0
  %304 = vmatprep.subr.mxu0 0.0
  %305 = vmatpush1.msra.mxu0 0.0
  %306 = vmatprep.subr.mxu0 0.0
  %307 = vmatpush1.msra.mxu0 0.0
  %308 = vmatprep.subr.mxu0 0.0
  %309 = vmatpush1.msra.mxu0 0.0
  %310 = vmatprep.subr.mxu0 0.0
  %311 = vmatpush1.msra.mxu0 0.0
  %312 = vmatprep.subr.mxu0 0.0
  %313 = vmatpush1.msra.mxu0 0.0
  %314 = vmatprep.subr.mxu0 0.0
  %315 = vmatpush1.msra.mxu0 0.0
  %316 = vmatprep.subr.mxu0 0.0
  %317 = vmatpush1.msra.mxu0 0.0
  %318 = vmatprep.subr.mxu0 0.0
  %319 = vmatpush1.msra.mxu0 0.0
  %320 = vmatprep.subr.mxu0 0.0
  %321 = vmatpush1.msra.mxu0 0.0
  %322 = vmatprep.subr.mxu0 0.0
  %323 = vmatpush1.msra.mxu0 0.0
  %324 = vmatprep.subr.mxu0 0.0
  %325 = vmatpush1.msra.mxu0 0.0
  %326 = vmatprep.subr.mxu0 0.0
  %327 = vmatpush1.msra.mxu0 0.0
  %328 = vmatprep.subr.mxu0 0.0
  %329 = vmatpush1.msra.mxu0 0.0
  %330 = vmatprep.subr.mxu0 0.0
  %331 = vmatpush1.msra.mxu0 0.0
  %332 = vmatprep.subr.mxu0 0.0
  %333 = vmatpush1.msra.mxu0 0.0
  %334 = vmatprep.subr.mxu0 0.0
  %335 = vmatpush1.msra.mxu0 0.0
  %336 = vmatprep.subr.mxu0 0.0
  %337 = vmatpush1.msra.mxu0 0.0
  %338 = vmatprep.subr.mxu0 0.0
  %339 = vmatpush1.msra.mxu0 0.0
  %340 = vmatprep.subr.mxu0 0.0
  %341 = vmatpush1.msra.mxu0 0.0
  %342 = vmatprep.subr.mxu0 0.0
  %343 = vmatpush1.msra.mxu0 0.0
  %344 = vmatprep.subr.mxu0 0.0
  %345 = vmatpush1.msra.mxu0 0.0
  %346 = vmatprep.subr.mxu0 0.0
  %347 = vmatpush1.msra.mxu0 0.0
  %348 = vmatprep.subr.mxu0 0.0
  %349 = vmatpush1.msra.mxu0 0.0
  %350 = vmatprep.subr.mxu0 0.0
  %351 = vmatpush1.msra.mxu0 0.0
  %352 = vmatprep.subr.mxu0 0.0
  %353 = vmatpush1.msra.mxu0 0.0
  %354 = vmatprep.subr.mxu0 0.0
  %355 = vmatpush1.msra.mxu0 0.0
  %356 = vmatprep.mubr.f32.mxu0 0.0
  %v357 = vand.u32 %v49, 4294901760
  %v358 = vsub.f32 %v49, %v357
  %359 = vmatmul.mubr.f32.gmra.mrb[0].mxu0 %v358
  %v360 = vpop.f32.mrb[0].mxu0
  %v361 = vadd.f32 %v268, %v360
  %v362 = vpop.f32.mrb[0].mxu0
  %v363 = vadd.f32 %v270, %v362
  %364 = vdwg.mxu0
  %v365 = vand.u32 %v22, 4294901760
  %366 = vmatprep.subr.mxu0 %v365
  %v367 = vand.u32 %v21, 4294901760
  %368 = vmatpush1.msra.mxu0 %v367
  %v369 = vand.u32 %v26, 4294901760
  %370 = vmatprep.subr.mxu0 %v369
  %v371 = vand.u32 %v25, 4294901760
  %372 = vmatpush1.msra.mxu0 %v371
  %v373 = vand.u32 %v30, 4294901760
  %374 = vmatprep.subr.mxu0 %v373
  %v375 = vand.u32 %v29, 4294901760
  %376 = vmatpush1.msra.mxu0 %v375
  %v377 = vand.u32 %v34, 4294901760
  %378 = vmatprep.subr.mxu0 %v377
  %v379 = vand.u32 %v33, 4294901760
  %380 = vmatpush1.msra.mxu0 %v379
  %v381 = vand.u32 %v56, 4294901760
  %382 = vmatprep.subr.mxu0 %v381
  %v383 = vand.u32 %v53, 4294901760
  %384 = vmatpush1.msra.mxu0 %v383
  %385 = vmatprep.subr.mxu0 0.0
  %386 = vmatpush1.msra.mxu0 0.0
  %387 = vmatprep.subr.mxu0 0.0
  %388 = vmatpush1.msra.mxu0 0.0
  %389 = vmatprep.subr.mxu0 0.0
  %390 = vmatpush1.msra.mxu0 0.0
  %391 = vmatprep.subr.mxu0 0.0
  %392 = vmatpush1.msra.mxu0 0.0
  %393 = vmatprep.subr.mxu0 0.0
  %394 = vmatpush1.msra.mxu0 0.0
  %395 = vmatprep.subr.mxu0 0.0
  %396 = vmatpush1.msra.mxu0 0.0
  %397 = vmatprep.subr.mxu0 0.0
  %398 = vmatpush1.msra.mxu0 0.0
  %399 = vmatprep.subr.mxu0 0.0
  %400 = vmatpush1.msra.mxu0 0.0
  %401 = vmatprep.subr.mxu0 0.0
  %402 = vmatpush1.msra.mxu0 0.0
  %403 = vmatprep.subr.mxu0 0.0
  %404 = vmatpush1.msra.mxu0 0.0
  %405 = vmatprep.subr.mxu0 0.0
  %406 = vmatpush1.msra.mxu0 0.0
  %407 = vmatprep.subr.mxu0 0.0
  %408 = vmatpush1.msra.mxu0 0.0
  %409 = vmatprep.subr.mxu0 0.0
  %410 = vmatpush1.msra.mxu0 0.0
  %411 = vmatprep.subr.mxu0 0.0
  %412 = vmatpush1.msra.mxu0 0.0
  %413 = vmatprep.subr.mxu0 0.0
  %414 = vmatpush1.msra.mxu0 0.0
  %415 = vmatprep.subr.mxu0 0.0
  %416 = vmatpush1.msra.mxu0 0.0
  %417 = vmatprep.subr.mxu0 0.0
  %418 = vmatpush1.msra.mxu0 0.0
  %419 = vmatprep.subr.mxu0 0.0
  %420 = vmatpush1.msra.mxu0 0.0
  %421 = vmatprep.subr.mxu0 0.0
  %422 = vmatpush1.msra.mxu0 0.0
  %423 = vmatprep.subr.mxu0 0.0
  %424 = vmatpush1.msra.mxu0 0.0
  %425 = vmatprep.subr.mxu0 0.0
  %426 = vmatpush1.msra.mxu0 0.0
  %427 = vmatprep.subr.mxu0 0.0
  %428 = vmatpush1.msra.mxu0 0.0
  %429 = vmatprep.subr.mxu0 0.0
  %430 = vmatpush1.msra.mxu0 0.0
  %431 = vmatprep.subr.mxu0 0.0
  %432 = vmatpush1.msra.mxu0 0.0
  %433 = vmatprep.subr.mxu0 0.0
  %434 = vmatpush1.msra.mxu0 0.0
  %435 = vmatprep.subr.mxu0 0.0
  %436 = vmatpush1.msra.mxu0 0.0
  %437 = vmatprep.subr.mxu0 0.0
  %438 = vmatpush1.msra.mxu0 0.0
  %439 = vmatprep.mubr.f32.mxu0 0.0
  %v440 = vand.u32 %v49, 4294901760
  %v441 = vsub.f32 %v49, %v440
  %v442 = vand.u32 %v441, 4294901760
  %443 = vmatmul.mubr.f32.gmra.mrb[0].mxu0 %v442
  %v444 = vpop.f32.mrb[0].mxu0
  %v445 = vadd.f32 %v361, %v444
  %v446 = vpop.f32.mrb[0].mxu0
  %v447 = vadd.f32 %v363, %v446
  %448 = vdwg.mxu0
  %v449 = vand.u32 %v22, 4294901760
  %v450 = vsub.f32 %v22, %v449
  %v451 = vand.u32 %v450, 4294901760
  %452 = vmatprep.subr.mxu0 %v451
  %v453 = vand.u32 %v21, 4294901760
  %v454 = vsub.f32 %v21, %v453
  %v455 = vand.u32 %v454, 4294901760
  %456 = vmatpush1.msra.mxu0 %v455
  %v457 = vand.u32 %v26, 4294901760
  %v458 = vsub.f32 %v26, %v457
  %v459 = vand.u32 %v458, 4294901760
  %460 = vmatprep.subr.mxu0 %v459
  %v461 = vand.u32 %v25, 4294901760
  %v462 = vsub.f32 %v25, %v461
  %v463 = vand.u32 %v462, 4294901760
  %464 = vmatpush1.msra.mxu0 %v463
  %v465 = vand.u32 %v30, 4294901760
  %v466 = vsub.f32 %v30, %v465
  %v467 = vand.u32 %v466, 4294901760
  %468 = vmatprep.subr.mxu0 %v467
  %v469 = vand.u32 %v29, 4294901760
  %v470 = vsub.f32 %v29, %v469
  %v471 = vand.u32 %v470, 4294901760
  %472 = vmatpush1.msra.mxu0 %v471
  %v473 = vand.u32 %v34, 4294901760
  %v474 = vsub.f32 %v34, %v473
  %v475 = vand.u32 %v474, 4294901760
  %476 = vmatprep.subr.mxu0 %v475
  %v477 = vand.u32 %v33, 4294901760
  %v478 = vsub.f32 %v33, %v477
  %v479 = vand.u32 %v478, 4294901760
  %480 = vmatpush1.msra.mxu0 %v479
  %v481 = vand.u32 %v56, 4294901760
  %v482 = vsub.f32 %v56, %v481
  %v483 = vand.u32 %v482, 4294901760
  %484 = vmatprep.subr.mxu0 %v483
  %v485 = vand.u32 %v53, 4294901760
  %v486 = vsub.f32 %v53, %v485
  %v487 = vand.u32 %v486, 4294901760
  %488 = vmatpush1.msra.mxu0 %v487
  %489 = vmatprep.subr.mxu0 0.0
  %490 = vmatpush1.msra.mxu0 0.0
  %491 = vmatprep.subr.mxu0 0.0
  %492 = vmatpush1.msra.mxu0 0.0
  %493 = vmatprep.subr.mxu0 0.0
  %494 = vmatpush1.msra.mxu0 0.0
  %495 = vmatprep.subr.mxu0 0.0
  %496 = vmatpush1.msra.mxu0 0.0
  %497 = vmatprep.subr.mxu0 0.0
  %498 = vmatpush1.msra.mxu0 0.0
  %499 = vmatprep.subr.mxu0 0.0
  %500 = vmatpush1.msra.mxu0 0.0
  %501 = vmatprep.subr.mxu0 0.0
  %502 = vmatpush1.msra.mxu0 0.0
  %503 = vmatprep.subr.mxu0 0.0
  %504 = vmatpush1.msra.mxu0 0.0
  %505 = vmatprep.subr.mxu0 0.0
  %506 = vmatpush1.msra.mxu0 0.0
  %507 = vmatprep.subr.mxu0 0.0
  %508 = vmatpush1.msra.mxu0 0.0
  %509 = vmatprep.subr.mxu0 0.0
  %510 = vmatpush1.msra.mxu0 0.0
  %511 = vmatprep.subr.mxu0 0.0
  %512 = vmatpush1.msra.mxu0 0.0
  %513 = vmatprep.subr.mxu0 0.0
  %514 = vmatpush1.msra.mxu0 0.0
  %515 = vmatprep.subr.mxu0 0.0
  %516 = vmatpush1.msra.mxu0 0.0
  %517 = vmatprep.subr.mxu0 0.0
  %518 = vmatpush1.msra.mxu0 0.0
  %519 = vmatprep.subr.mxu0 0.0
  %520 = vmatpush1.msra.mxu0 0.0
  %521 = vmatprep.subr.mxu0 0.0
  %522 = vmatpush1.msra.mxu0 0.0
  %523 = vmatprep.subr.mxu0 0.0
  %524 = vmatpush1.msra.mxu0 0.0
  %525 = vmatprep.subr.mxu0 0.0
  %526 = vmatpush1.msra.mxu0 0.0
  %527 = vmatprep.subr.mxu0 0.0
  %528 = vmatpush1.msra.mxu0 0.0
  %529 = vmatprep.subr.mxu0 0.0
  %530 = vmatpush1.msra.mxu0 0.0
  %531 = vmatprep.subr.mxu0 0.0
  %532 = vmatpush1.msra.mxu0 0.0
  %533 = vmatprep.subr.mxu0 0.0
  %534 = vmatpush1.msra.mxu0 0.0
  %535 = vmatprep.subr.mxu0 0.0
  %536 = vmatpush1.msra.mxu0 0.0
  %537 = vmatprep.subr.mxu0 0.0
  %538 = vmatpush1.msra.mxu0 0.0
  %539 = vmatprep.subr.mxu0 0.0
  %540 = vmatpush1.msra.mxu0 0.0
  %541 = vmatprep.subr.mxu0 0.0
  %542 = vmatpush1.msra.mxu0 0.0
  %543 = vmatprep.mubr.f32.mxu0 0.0
  %v544 = vand.u32 %v49, 4294901760
  %545 = vmatmul.mubr.f32.gmra.mrb[0].mxu0 %v544
  %v546 = vpop.f32.mrb[0].mxu0
  %v547 = vadd.f32 %v445, %v546
  %v548 = vpop.f32.mrb[0].mxu0
  %v549 = vadd.f32 %v447, %v548
  %550 = vdwg.mxu0
  %v551 = vand.u32 %v22, 4294901760
  %552 = vmatprep.subr.mxu0 %v551
  %v553 = vand.u32 %v21, 4294901760
  %554 = vmatpush1.msra.mxu0 %v553
  %v555 = vand.u32 %v26, 4294901760
  %556 = vmatprep.subr.mxu0 %v555
  %v557 = vand.u32 %v25, 4294901760
  %558 = vmatpush1.msra.mxu0 %v557
  %v559 = vand.u32 %v30, 4294901760
  %560 = vmatprep.subr.mxu0 %v559
  %v561 = vand.u32 %v29, 4294901760
  %562 = vmatpush1.msra.mxu0 %v561
  %v563 = vand.u32 %v34, 4294901760
  %564 = vmatprep.subr.mxu0 %v563
  %v565 = vand.u32 %v33, 4294901760
  %566 = vmatpush1.msra.mxu0 %v565
  %v567 = vand.u32 %v56, 4294901760
  %568 = vmatprep.subr.mxu0 %v567
  %v569 = vand.u32 %v53, 4294901760
  %570 = vmatpush1.msra.mxu0 %v569
  %571 = vmatprep.subr.mxu0 0.0
  %572 = vmatpush1.msra.mxu0 0.0
  %573 = vmatprep.subr.mxu0 0.0
  %574 = vmatpush1.msra.mxu0 0.0
  %575 = vmatprep.subr.mxu0 0.0
  %576 = vmatpush1.msra.mxu0 0.0
  %577 = vmatprep.subr.mxu0 0.0
  %578 = vmatpush1.msra.mxu0 0.0
  %579 = vmatprep.subr.mxu0 0.0
  %580 = vmatpush1.msra.mxu0 0.0
  %581 = vmatprep.subr.mxu0 0.0
  %582 = vmatpush1.msra.mxu0 0.0
  %583 = vmatprep.subr.mxu0 0.0
  %584 = vmatpush1.msra.mxu0 0.0
  %585 = vmatprep.subr.mxu0 0.0
  %586 = vmatpush1.msra.mxu0 0.0
  %587 = vmatprep.subr.mxu0 0.0
  %588 = vmatpush1.msra.mxu0 0.0
  %589 = vmatprep.subr.mxu0 0.0
  %590 = vmatpush1.msra.mxu0 0.0
  %591 = vmatprep.subr.mxu0 0.0
  %592 = vmatpush1.msra.mxu0 0.0
  %593 = vmatprep.subr.mxu0 0.0
  %594 = vmatpush1.msra.mxu0 0.0
  %595 = vmatprep.subr.mxu0 0.0
  %596 = vmatpush1.msra.mxu0 0.0
  %597 = vmatprep.subr.mxu0 0.0
  %598 = vmatpush1.msra.mxu0 0.0
  %599 = vmatprep.subr.mxu0 0.0
  %600 = vmatpush1.msra.mxu0 0.0
  %601 = vmatprep.subr.mxu0 0.0
  %602 = vmatpush1.msra.mxu0 0.0
  %603 = vmatprep.subr.mxu0 0.0
  %604 = vmatpush1.msra.mxu0 0.0
  %605 = vmatprep.subr.mxu0 0.0
  %606 = vmatpush1.msra.mxu0 0.0
  %607 = vmatprep.subr.mxu0 0.0
  %608 = vmatpush1.msra.mxu0 0.0
  %609 = vmatprep.subr.mxu0 0.0
  %610 = vmatpush1.msra.mxu0 0.0
  %611 = vmatprep.subr.mxu0 0.0
  %612 = vmatpush1.msra.mxu0 0.0
  %613 = vmatprep.subr.mxu0 0.0
  %614 = vmatpush1.msra.mxu0 0.0
  %615 = vmatprep.subr.mxu0 0.0
  %616 = vmatpush1.msra.mxu0 0.0
  %617 = vmatprep.subr.mxu0 0.0
  %618 = vmatpush1.msra.mxu0 0.0
  %619 = vmatprep.subr.mxu0 0.0
  %620 = vmatpush1.msra.mxu0 0.0
  %621 = vmatprep.subr.mxu0 0.0
  %622 = vmatpush1.msra.mxu0 0.0
  %623 = vmatprep.subr.mxu0 0.0
  %624 = vmatpush1.msra.mxu0 0.0
  %625 = vmatprep.mubr.f32.mxu0 0.0
  %v626 = vand.u32 %v49, 4294901760
  %627 = vmatmul.mubr.f32.gmra.mrb[0].mxu0 %v626
  %v628 = vpop.f32.mrb[0].mxu0
  %v629 = vadd.f32 %v547, %v628
  %v630 = vpop.f32.mrb[0].mxu0
  %v631 = vadd.f32 %v549, %v630
  %632 = vdwg.mxu0
  %v633 = vand.u32 %v24, 4294901760
  %634 = vmatprep.subr.mxu0 %v633
  %v635 = vand.u32 %v23, 4294901760
  %636 = vmatpush1.msra.mxu0 %v635
  %v637 = vand.u32 %v28, 4294901760
  %638 = vmatprep.subr.mxu0 %v637
  %v639 = vand.u32 %v27, 4294901760
  %640 = vmatpush1.msra.mxu0 %v639
  %v641 = vand.u32 %v32, 4294901760
  %642 = vmatprep.subr.mxu0 %v641
  %v643 = vand.u32 %v31, 4294901760
  %644 = vmatpush1.msra.mxu0 %v643
  %v645 = vand.u32 %v36, 4294901760
  %646 = vmatprep.subr.mxu0 %v645
  %v647 = vand.u32 %v35, 4294901760
  %648 = vmatpush1.msra.mxu0 %v647
  %v649 = vand.u32 %v62, 4294901760
  %650 = vmatprep.subr.mxu0 %v649
  %v651 = vand.u32 %v59, 4294901760
  %652 = vmatpush1.msra.mxu0 %v651
  %653 = vmatprep.subr.mxu0 0.0
  %654 = vmatpush1.msra.mxu0 0.0
  %655 = vmatprep.subr.mxu0 0.0
  %656 = vmatpush1.msra.mxu0 0.0
  %657 = vmatprep.subr.mxu0 0.0
  %658 = vmatpush1.msra.mxu0 0.0
  %659 = vmatprep.subr.mxu0 0.0
  %660 = vmatpush1.msra.mxu0 0.0
  %661 = vmatprep.subr.mxu0 0.0
  %662 = vmatpush1.msra.mxu0 0.0
  %663 = vmatprep.subr.mxu0 0.0
  %664 = vmatpush1.msra.mxu0 0.0
  %665 = vmatprep.subr.mxu0 0.0
  %666 = vmatpush1.msra.mxu0 0.0
  %667 = vmatprep.subr.mxu0 0.0
  %668 = vmatpush1.msra.mxu0 0.0
  %669 = vmatprep.subr.mxu0 0.0
  %670 = vmatpush1.msra.mxu0 0.0
  %671 = vmatprep.subr.mxu0 0.0
  %672 = vmatpush1.msra.mxu0 0.0
  %673 = vmatprep.subr.mxu0 0.0
  %674 = vmatpush1.msra.mxu0 0.0
  %675 = vmatprep.subr.mxu0 0.0
  %676 = vmatpush1.msra.mxu0 0.0
  %677 = vmatprep.subr.mxu0 0.0
  %678 = vmatpush1.msra.mxu0 0.0
  %679 = vmatprep.subr.mxu0 0.0
  %680 = vmatpush1.msra.mxu0 0.0
  %681 = vmatprep.subr.mxu0 0.0
  %682 = vmatpush1.msra.mxu0 0.0
  %683 = vmatprep.subr.mxu0 0.0
  %684 = vmatpush1.msra.mxu0 0.0
  %685 = vmatprep.subr.mxu0 0.0
  %686 = vmatpush1.msra.mxu0 0.0
  %687 = vmatprep.subr.mxu0 0.0
  %688 = vmatpush1.msra.mxu0 0.0
  %689 = vmatprep.subr.mxu0 0.0
  %690 = vmatpush1.msra.mxu0 0.0
  %691 = vmatprep.subr.mxu0 0.0
  %692 = vmatpush1.msra.mxu0 0.0
  %693 = vmatprep.subr.mxu0 0.0
  %694 = vmatpush1.msra.mxu0 0.0
  %695 = vmatprep.subr.mxu0 0.0
  %696 = vmatpush1.msra.mxu0 0.0
  %697 = vmatprep.subr.mxu0 0.0
  %698 = vmatpush1.msra.mxu0 0.0
  %699 = vmatprep.subr.mxu0 0.0
  %700 = vmatpush1.msra.mxu0 0.0
  %701 = vmatprep.subr.mxu0 0.0
  %702 = vmatpush1.msra.mxu0 0.0
  %703 = vmatprep.subr.mxu0 0.0
  %704 = vmatpush1.msra.mxu0 0.0
  %705 = vmatprep.subr.mxu0 0.0
  %706 = vmatpush1.msra.mxu0 0.0
  %707 = vmatprep.mubr.f32.mxu0 0.0
  %v708 = vand.u32 %v49, 4294901760
  %v709 = vsub.f32 %v49, %v708
  %v710 = vand.u32 %v709, 4294901760
  %v711 = vsub.f32 %v709, %v710
  %v712 = vand.u32 %v711, 4294901760
  %713 = vmatmul.mubr.f32.gmra.mrb[0].mxu0 %v712
  %v714 = vpop.f32.mrb[0].mxu0
  %v715 = vadd.f32 %v45, %v714
  %v716 = vpop.f32.mrb[0].mxu0
  %v717 = vadd.f32 %v45, %v716
  %718 = vdwg.mxu0
  %v719 = vand.u32 %v24, 4294901760
  %v720 = vsub.f32 %v24, %v719
  %v721 = vand.u32 %v720, 4294901760
  %v722 = vsub.f32 %v720, %v721
  %v723 = vand.u32 %v722, 4294901760
  %724 = vmatprep.subr.mxu0 %v723
  %v725 = vand.u32 %v23, 4294901760
  %v726 = vsub.f32 %v23, %v725
  %v727 = vand.u32 %v726, 4294901760
  %v728 = vsub.f32 %v726, %v727
  %v729 = vand.u32 %v728, 4294901760
  %730 = vmatpush1.msra.mxu0 %v729
  %v731 = vand.u32 %v28, 4294901760
  %v732 = vsub.f32 %v28, %v731
  %v733 = vand.u32 %v732, 4294901760
  %v734 = vsub.f32 %v732, %v733
  %v735 = vand.u32 %v734, 4294901760
  %736 = vmatprep.subr.mxu0 %v735
  %v737 = vand.u32 %v27, 4294901760
  %v738 = vsub.f32 %v27, %v737
  %v739 = vand.u32 %v738, 4294901760
  %v740 = vsub.f32 %v738, %v739
  %v741 = vand.u32 %v740, 4294901760
  %742 = vmatpush1.msra.mxu0 %v741
  %v743 = vand.u32 %v32, 4294901760
  %v744 = vsub.f32 %v32, %v743
  %v745 = vand.u32 %v744, 4294901760
  %v746 = vsub.f32 %v744, %v745
  %v747 = vand.u32 %v746, 4294901760
  %748 = vmatprep.subr.mxu0 %v747
  %v749 = vand.u32 %v31, 4294901760
  %v750 = vsub.f32 %v31, %v749
  %v751 = vand.u32 %v750, 4294901760
  %v752 = vsub.f32 %v750, %v751
  %v753 = vand.u32 %v752, 4294901760
  %754 = vmatpush1.msra.mxu0 %v753
  %v755 = vand.u32 %v36, 4294901760
  %v756 = vsub.f32 %v36, %v755
  %v757 = vand.u32 %v756, 4294901760
  %v758 = vsub.f32 %v756, %v757
  %v759 = vand.u32 %v758, 4294901760
  %760 = vmatprep.subr.mxu0 %v759
  %v761 = vand.u32 %v35, 4294901760
  %v762 = vsub.f32 %v35, %v761
  %v763 = vand.u32 %v762, 4294901760
  %v764 = vsub.f32 %v762, %v763
  %v765 = vand.u32 %v764, 4294901760
  %766 = vmatpush1.msra.mxu0 %v765
  %v767 = vand.u32 %v62, 4294901760
  %v768 = vsub.f32 %v62, %v767
  %v769 = vand.u32 %v768, 4294901760
  %v770 = vsub.f32 %v768, %v769
  %v771 = vand.u32 %v770, 4294901760
  %772 = vmatprep.subr.mxu0 %v771
  %v773 = vand.u32 %v59, 4294901760
  %v774 = vsub.f32 %v59, %v773
  %v775 = vand.u32 %v774, 4294901760
  %v776 = vsub.f32 %v774, %v775
  %v777 = vand.u32 %v776, 4294901760
  %778 = vmatpush1.msra.mxu0 %v777
  %779 = vmatprep.subr.mxu0 0.0
  %780 = vmatpush1.msra.mxu0 0.0
  %781 = vmatprep.subr.mxu0 0.0
  %782 = vmatpush1.msra.mxu0 0.0
  %783 = vmatprep.subr.mxu0 0.0
  %784 = vmatpush1.msra.mxu0 0.0
  %785 = vmatprep.subr.mxu0 0.0
  %786 = vmatpush1.msra.mxu0 0.0
  %787 = vmatprep.subr.mxu0 0.0
  %788 = vmatpush1.msra.mxu0 0.0
  %789 = vmatprep.subr.mxu0 0.0
  %790 = vmatpush1.msra.mxu0 0.0
  %791 = vmatprep.subr.mxu0 0.0
  %792 = vmatpush1.msra.mxu0 0.0
  %793 = vmatprep.subr.mxu0 0.0
  %794 = vmatpush1.msra.mxu0 0.0
  %795 = vmatprep.subr.mxu0 0.0
  %796 = vmatpush1.msra.mxu0 0.0
  %797 = vmatprep.subr.mxu0 0.0
  %798 = vmatpush1.msra.mxu0 0.0
  %799 = vmatprep.subr.mxu0 0.0
  %800 = vmatpush1.msra.mxu0 0.0
  %801 = vmatprep.subr.mxu0 0.0
  %802 = vmatpush1.msra.mxu0 0.0
  %803 = vmatprep.subr.mxu0 0.0
  %804 = vmatpush1.msra.mxu0 0.0
  %805 = vmatprep.subr.mxu0 0.0
  %806 = vmatpush1.msra.mxu0 0.0
  %807 = vmatprep.subr.mxu0 0.0
  %808 = vmatpush1.msra.mxu0 0.0
  %809 = vmatprep.subr.mxu0 0.0
  %810 = vmatpush1.msra.mxu0 0.0
  %811 = vmatprep.subr.mxu0 0.0
  %812 = vmatpush1.msra.mxu0 0.0
  %813 = vmatprep.subr.mxu0 0.0
  %814 = vmatpush1.msra.mxu0 0.0
  %815 = vmatprep.subr.mxu0 0.0
  %816 = vmatpush1.msra.mxu0 0.0
  %817 = vmatprep.subr.mxu0 0.0
  %818 = vmatpush1.msra.mxu0 0.0
  %819 = vmatprep.subr.mxu0 0.0
  %820 = vmatpush1.msra.mxu0 0.0
  %821 = vmatprep.subr.mxu0 0.0
  %822 = vmatpush1.msra.mxu0 0.0
  %823 = vmatprep.subr.mxu0 0.0
  %824 = vmatpush1.msra.mxu0 0.0
  %825 = vmatprep.subr.mxu0 0.0
  %826 = vmatpush1.msra.mxu0 0.0
  %827 = vmatprep.subr.mxu0 0.0
  %828 = vmatpush1.msra.mxu0 0.0
  %829 = vmatprep.subr.mxu0 0.0
  %830 = vmatpush1.msra.mxu0 0.0
  %831 = vmatprep.subr.mxu0 0.0
  %832 = vmatpush1.msra.mxu0 0.0
  %833 = vmatprep.mubr.f32.mxu0 0.0
  %v834 = vand.u32 %v49, 4294901760
  %835 = vmatmul.mubr.f32.gmra.mrb[0].mxu0 %v834
  %v836 = vpop.f32.mrb[0].mxu0
  %v837 = vadd.f32 %v715, %v836
  %v838 = vpop.f32.mrb[0].mxu0
  %v839 = vadd.f32 %v717, %v838
  %840 = vdwg.mxu0
  %v841 = vand.u32 %v24, 4294901760
  %v842 = vsub.f32 %v24, %v841
  %843 = vmatprep.subr.mxu0 %v842
  %v844 = vand.u32 %v23, 4294901760
  %v845 = vsub.f32 %v23, %v844
  %846 = vmatpush1.msra.mxu0 %v845
  %v847 = vand.u32 %v28, 4294901760
  %v848 = vsub.f32 %v28, %v847
  %849 = vmatprep.subr.mxu0 %v848
  %v850 = vand.u32 %v27, 4294901760
  %v851 = vsub.f32 %v27, %v850
  %852 = vmatpush1.msra.mxu0 %v851
  %v853 = vand.u32 %v32, 4294901760
  %v854 = vsub.f32 %v32, %v853
  %855 = vmatprep.subr.mxu0 %v854
  %v856 = vand.u32 %v31, 4294901760
  %v857 = vsub.f32 %v31, %v856
  %858 = vmatpush1.msra.mxu0 %v857
  %v859 = vand.u32 %v36, 4294901760
  %v860 = vsub.f32 %v36, %v859
  %861 = vmatprep.subr.mxu0 %v860
  %v862 = vand.u32 %v35, 4294901760
  %v863 = vsub.f32 %v35, %v862
  %864 = vmatpush1.msra.mxu0 %v863
  %v865 = vand.u32 %v62, 4294901760
  %v866 = vsub.f32 %v62, %v865
  %867 = vmatprep.subr.mxu0 %v866
  %v868 = vand.u32 %v59, 4294901760
  %v869 = vsub.f32 %v59, %v868
  %870 = vmatpush1.msra.mxu0 %v869
  %871 = vmatprep.subr.mxu0 0.0
  %872 = vmatpush1.msra.mxu0 0.0
  %873 = vmatprep.subr.mxu0 0.0
  %874 = vmatpush1.msra.mxu0 0.0
  %875 = vmatprep.subr.mxu0 0.0
  %876 = vmatpush1.msra.mxu0 0.0
  %877 = vmatprep.subr.mxu0 0.0
  %878 = vmatpush1.msra.mxu0 0.0
  %879 = vmatprep.subr.mxu0 0.0
  %880 = vmatpush1.msra.mxu0 0.0
  %881 = vmatprep.subr.mxu0 0.0
  %882 = vmatpush1.msra.mxu0 0.0
  %883 = vmatprep.subr.mxu0 0.0
  %884 = vmatpush1.msra.mxu0 0.0
  %885 = vmatprep.subr.mxu0 0.0
  %886 = vmatpush1.msra.mxu0 0.0
  %887 = vmatprep.subr.mxu0 0.0
  %888 = vmatpush1.msra.mxu0 0.0
  %889 = vmatprep.subr.mxu0 0.0
  %890 = vmatpush1.msra.mxu0 0.0
  %891 = vmatprep.subr.mxu0 0.0
  %892 = vmatpush1.msra.mxu0 0.0
  %893 = vmatprep.subr.mxu0 0.0
  %894 = vmatpush1.msra.mxu0 0.0
  %895 = vmatprep.subr.mxu0 0.0
  %896 = vmatpush1.msra.mxu0 0.0
  %897 = vmatprep.subr.mxu0 0.0
  %898 = vmatpush1.msra.mxu0 0.0
  %899 = vmatprep.subr.mxu0 0.0
  %900 = vmatpush1.msra.mxu0 0.0
  %901 = vmatprep.subr.mxu0 0.0
  %902 = vmatpush1.msra.mxu0 0.0
  %903 = vmatprep.subr.mxu0 0.0
  %904 = vmatpush1.msra.mxu0 0.0
  %905 = vmatprep.subr.mxu0 0.0
  %906 = vmatpush1.msra.mxu0 0.0
  %907 = vmatprep.subr.mxu0 0.0
  %908 = vmatpush1.msra.mxu0 0.0
  %909 = vmatprep.subr.mxu0 0.0
  %910 = vmatpush1.msra.mxu0 0.0
  %911 = vmatprep.subr.mxu0 0.0
  %912 = vmatpush1.msra.mxu0 0.0
  %913 = vmatprep.subr.mxu0 0.0
  %914 = vmatpush1.msra.mxu0 0.0
  %915 = vmatprep.subr.mxu0 0.0
  %916 = vmatpush1.msra.mxu0 0.0
  %917 = vmatprep.subr.mxu0 0.0
  %918 = vmatpush1.msra.mxu0 0.0
  %919 = vmatprep.subr.mxu0 0.0
  %920 = vmatpush1.msra.mxu0 0.0
  %921 = vmatprep.subr.mxu0 0.0
  %922 = vmatpush1.msra.mxu0 0.0
  %923 = vmatprep.subr.mxu0 0.0
  %924 = vmatpush1.msra.mxu0 0.0
  %925 = vmatprep.mubr.f32.mxu0 0.0
  %v926 = vand.u32 %v49, 4294901760
  %v927 = vsub.f32 %v49, %v926
  %928 = vmatmul.mubr.f32.gmra.mrb[0].mxu0 %v927
  %v929 = vpop.f32.mrb[0].mxu0
  %v930 = vadd.f32 %v837, %v929
  %v931 = vpop.f32.mrb[0].mxu0
  %v932 = vadd.f32 %v839, %v931
  %933 = vdwg.mxu0
  %v934 = vand.u32 %v24, 4294901760
  %935 = vmatprep.subr.mxu0 %v934
  %v936 = vand.u32 %v23, 4294901760
  %937 = vmatpush1.msra.mxu0 %v936
  %v938 = vand.u32 %v28, 4294901760
  %939 = vmatprep.subr.mxu0 %v938
  %v940 = vand.u32 %v27, 4294901760
  %941 = vmatpush1.msra.mxu0 %v940
  %v942 = vand.u32 %v32, 4294901760
  %943 = vmatprep.subr.mxu0 %v942
  %v944 = vand.u32 %v31, 4294901760
  %945 = vmatpush1.msra.mxu0 %v944
  %v946 = vand.u32 %v36, 4294901760
  %947 = vmatprep.subr.mxu0 %v946
  %v948 = vand.u32 %v35, 4294901760
  %949 = vmatpush1.msra.mxu0 %v948
  %v950 = vand.u32 %v62, 4294901760
  %951 = vmatprep.subr.mxu0 %v950
  %v952 = vand.u32 %v59, 4294901760
  %953 = vmatpush1.msra.mxu0 %v952
  %954 = vmatprep.subr.mxu0 0.0
  %955 = vmatpush1.msra.mxu0 0.0
  %956 = vmatprep.subr.mxu0 0.0
  %957 = vmatpush1.msra.mxu0 0.0
  %958 = vmatprep.subr.mxu0 0.0
  %959 = vmatpush1.msra.mxu0 0.0
  %960 = vmatprep.subr.mxu0 0.0
  %961 = vmatpush1.msra.mxu0 0.0
  %962 = vmatprep.subr.mxu0 0.0
  %963 = vmatpush1.msra.mxu0 0.0
  %964 = vmatprep.subr.mxu0 0.0
  %965 = vmatpush1.msra.mxu0 0.0
  %966 = vmatprep.subr.mxu0 0.0
  %967 = vmatpush1.msra.mxu0 0.0
  %968 = vmatprep.subr.mxu0 0.0
  %969 = vmatpush1.msra.mxu0 0.0
  %970 = vmatprep.subr.mxu0 0.0
  %971 = vmatpush1.msra.mxu0 0.0
  %972 = vmatprep.subr.mxu0 0.0
  %973 = vmatpush1.msra.mxu0 0.0
  %974 = vmatprep.subr.mxu0 0.0
  %975 = vmatpush1.msra.mxu0 0.0
  %976 = vmatprep.subr.mxu0 0.0
  %977 = vmatpush1.msra.mxu0 0.0
  %978 = vmatprep.subr.mxu0 0.0
  %979 = vmatpush1.msra.mxu0 0.0
  %980 = vmatprep.subr.mxu0 0.0
  %981 = vmatpush1.msra.mxu0 0.0
  %982 = vmatprep.subr.mxu0 0.0
  %983 = vmatpush1.msra.mxu0 0.0
  %984 = vmatprep.subr.mxu0 0.0
  %985 = vmatpush1.msra.mxu0 0.0
  %986 = vmatprep.subr.mxu0 0.0
  %987 = vmatpush1.msra.mxu0 0.0
  %988 = vmatprep.subr.mxu0 0.0
  %989 = vmatpush1.msra.mxu0 0.0
  %990 = vmatprep.subr.mxu0 0.0
  %991 = vmatpush1.msra.mxu0 0.0
  %992 = vmatprep.subr.mxu0 0.0
  %993 = vmatpush1.msra.mxu0 0.0
  %994 = vmatprep.subr.mxu0 0.0
  %995 = vmatpush1.msra.mxu0 0.0
  %996 = vmatprep.subr.mxu0 0.0
  %997 = vmatpush1.msra.mxu0 0.0
  %998 = vmatprep.subr.mxu0 0.0
  %999 = vmatpush1.msra.mxu0 0.0
  %1000 = vmatprep.subr.mxu0 0.0
  %1001 = vmatpush1.msra.mxu0 0.0
  %1002 = vmatprep.subr.mxu0 0.0
  %1003 = vmatpush1.msra.mxu0 0.0
  %1004 = vmatprep.subr.mxu0 0.0
  %1005 = vmatpush1.msra.mxu0 0.0
  %1006 = vmatprep.subr.mxu0 0.0
  %1007 = vmatpush1.msra.mxu0 0.0
  %1008 = vmatprep.mubr.f32.mxu0 0.0
  %v1009 = vand.u32 %v49, 4294901760
  %v1010 = vsub.f32 %v49, %v1009
  %v1011 = vand.u32 %v1010, 4294901760
  %1012 = vmatmul.mubr.f32.gmra.mrb[0].mxu0 %v1011
  %v1013 = vpop.f32.mrb[0].mxu0
  %v1014 = vadd.f32 %v930, %v1013
  %v1015 = vpop.f32.mrb[0].mxu0
  %v1016 = vadd.f32 %v932, %v1015
  %1017 = vdwg.mxu0
  %v1018 = vand.u32 %v24, 4294901760
  %v1019 = vsub.f32 %v24, %v1018
  %v1020 = vand.u32 %v1019, 4294901760
  %1021 = vmatprep.subr.mxu0 %v1020
  %v1022 = vand.u32 %v23, 4294901760
  %v1023 = vsub.f32 %v23, %v1022
  %v1024 = vand.u32 %v1023, 4294901760
  %1025 = vmatpush1.msra.mxu0 %v1024
  %v1026 = vand.u32 %v28, 4294901760
  %v1027 = vsub.f32 %v28, %v1026
  %v1028 = vand.u32 %v1027, 4294901760
  %1029 = vmatprep.subr.mxu0 %v1028
  %v1030 = vand.u32 %v27, 4294901760
  %v1031 = vsub.f32 %v27, %v1030
  %v1032 = vand.u32 %v1031, 4294901760
  %1033 = vmatpush1.msra.mxu0 %v1032
  %v1034 = vand.u32 %v32, 4294901760
  %v1035 = vsub.f32 %v32, %v1034
  %v1036 = vand.u32 %v1035, 4294901760
  %1037 = vmatprep.subr.mxu0 %v1036
  %v1038 = vand.u32 %v31, 4294901760
  %v1039 = vsub.f32 %v31, %v1038
  %v1040 = vand.u32 %v1039, 4294901760
  %1041 = vmatpush1.msra.mxu0 %v1040
  %v1042 = vand.u32 %v36, 4294901760
  %v1043 = vsub.f32 %v36, %v1042
  %v1044 = vand.u32 %v1043, 4294901760
  %1045 = vmatprep.subr.mxu0 %v1044
  %v1046 = vand.u32 %v35, 4294901760
  %v1047 = vsub.f32 %v35, %v1046
  %v1048 = vand.u32 %v1047, 4294901760
  %1049 = vmatpush1.msra.mxu0 %v1048
  %v1050 = vand.u32 %v62, 4294901760
  %v1051 = vsub.f32 %v62, %v1050
  %v1052 = vand.u32 %v1051, 4294901760
  %1053 = vmatprep.subr.mxu0 %v1052
  %v1054 = vand.u32 %v59, 4294901760
  %v1055 = vsub.f32 %v59, %v1054
  %v1056 = vand.u32 %v1055, 4294901760
  %1057 = vmatpush1.msra.mxu0 %v1056
  %1058 = vmatprep.subr.mxu0 0.0
  %1059 = vmatpush1.msra.mxu0 0.0
  %1060 = vmatprep.subr.mxu0 0.0
  %1061 = vmatpush1.msra.mxu0 0.0
  %1062 = vmatprep.subr.mxu0 0.0
  %1063 = vmatpush1.msra.mxu0 0.0
  %1064 = vmatprep.subr.mxu0 0.0
  %1065 = vmatpush1.msra.mxu0 0.0
  %1066 = vmatprep.subr.mxu0 0.0
  %1067 = vmatpush1.msra.mxu0 0.0
  %1068 = vmatprep.subr.mxu0 0.0
  %1069 = vmatpush1.msra.mxu0 0.0
  %1070 = vmatprep.subr.mxu0 0.0
  %1071 = vmatpush1.msra.mxu0 0.0
  %1072 = vmatprep.subr.mxu0 0.0
  %1073 = vmatpush1.msra.mxu0 0.0
  %1074 = vmatprep.subr.mxu0 0.0
  %1075 = vmatpush1.msra.mxu0 0.0
  %1076 = vmatprep.subr.mxu0 0.0
  %1077 = vmatpush1.msra.mxu0 0.0
  %1078 = vmatprep.subr.mxu0 0.0
  %1079 = vmatpush1.msra.mxu0 0.0
  %1080 = vmatprep.subr.mxu0 0.0
  %1081 = vmatpush1.msra.mxu0 0.0
  %1082 = vmatprep.subr.mxu0 0.0
  %1083 = vmatpush1.msra.mxu0 0.0
  %1084 = vmatprep.subr.mxu0 0.0
  %1085 = vmatpush1.msra.mxu0 0.0
  %1086 = vmatprep.subr.mxu0 0.0
  %1087 = vmatpush1.msra.mxu0 0.0
  %1088 = vmatprep.subr.mxu0 0.0
  %1089 = vmatpush1.msra.mxu0 0.0
  %1090 = vmatprep.subr.mxu0 0.0
  %1091 = vmatpush1.msra.mxu0 0.0
  %1092 = vmatprep.subr.mxu0 0.0
  %1093 = vmatpush1.msra.mxu0 0.0
  %1094 = vmatprep.subr.mxu0 0.0
  %1095 = vmatpush1.msra.mxu0 0.0
  %1096 = vmatprep.subr.mxu0 0.0
  %1097 = vmatpush1.msra.mxu0 0.0
  %1098 = vmatprep.subr.mxu0 0.0
  %1099 = vmatpush1.msra.mxu0 0.0
  %1100 = vmatprep.subr.mxu0 0.0
  %1101 = vmatpush1.msra.mxu0 0.0
  %1102 = vmatprep.subr.mxu0 0.0
  %1103 = vmatpush1.msra.mxu0 0.0
  %1104 = vmatprep.subr.mxu0 0.0
  %1105 = vmatpush1.msra.mxu0 0.0
  %1106 = vmatprep.subr.mxu0 0.0
  %1107 = vmatpush1.msra.mxu0 0.0
  %1108 = vmatprep.subr.mxu0 0.0
  %1109 = vmatpush1.msra.mxu0 0.0
  %1110 = vmatprep.subr.mxu0 0.0
  %1111 = vmatpush1.msra.mxu0 0.0
  %1112 = vmatprep.mubr.f32.mxu0 0.0
  %v1113 = vand.u32 %v49, 4294901760
  %1114 = vmatmul.mubr.f32.gmra.mrb[0].mxu0 %v1113
  %v1115 = vpop.f32.mrb[0].mxu0
  %v1116 = vadd.f32 %v1014, %v1115
  %v1117 = vpop.f32.mrb[0].mxu0
  %v1118 = vadd.f32 %v1016, %v1117
  %1119 = vdwg.mxu0
  %v1120 = vand.u32 %v24, 4294901760
  %1121 = vmatprep.subr.mxu0 %v1120
  %v1122 = vand.u32 %v23, 4294901760
  %1123 = vmatpush1.msra.mxu0 %v1122
  %v1124 = vand.u32 %v28, 4294901760
  %1125 = vmatprep.subr.mxu0 %v1124
  %v1126 = vand.u32 %v27, 4294901760
  %1127 = vmatpush1.msra.mxu0 %v1126
  %v1128 = vand.u32 %v32, 4294901760
  %1129 = vmatprep.subr.mxu0 %v1128
  %v1130 = vand.u32 %v31, 4294901760
  %1131 = vmatpush1.msra.mxu0 %v1130
  %v1132 = vand.u32 %v36, 4294901760
  %1133 = vmatprep.subr.mxu0 %v1132
  %v1134 = vand.u32 %v35, 4294901760
  %1135 = vmatpush1.msra.mxu0 %v1134
  %v1136 = vand.u32 %v62, 4294901760
  %1137 = vmatprep.subr.mxu0 %v1136
  %v1138 = vand.u32 %v59, 4294901760
  %1139 = vmatpush1.msra.mxu0 %v1138
  %1140 = vmatprep.subr.mxu0 0.0
  %1141 = vmatpush1.msra.mxu0 0.0
  %1142 = vmatprep.subr.mxu0 0.0
  %1143 = vmatpush1.msra.mxu0 0.0
  %1144 = vmatprep.subr.mxu0 0.0
  %1145 = vmatpush1.msra.mxu0 0.0
  %1146 = vmatprep.subr.mxu0 0.0
  %1147 = vmatpush1.msra.mxu0 0.0
  %1148 = vmatprep.subr.mxu0 0.0
  %1149 = vmatpush1.msra.mxu0 0.0
  %1150 = vmatprep.subr.mxu0 0.0
  %1151 = vmatpush1.msra.mxu0 0.0
  %1152 = vmatprep.subr.mxu0 0.0
  %1153 = vmatpush1.msra.mxu0 0.0
  %1154 = vmatprep.subr.mxu0 0.0
  %1155 = vmatpush1.msra.mxu0 0.0
  %1156 = vmatprep.subr.mxu0 0.0
  %1157 = vmatpush1.msra.mxu0 0.0
  %1158 = vmatprep.subr.mxu0 0.0
  %1159 = vmatpush1.msra.mxu0 0.0
  %1160 = vmatprep.subr.mxu0 0.0
  %1161 = vmatpush1.msra.mxu0 0.0
  %1162 = vmatprep.subr.mxu0 0.0
  %1163 = vmatpush1.msra.mxu0 0.0
  %1164 = vmatprep.subr.mxu0 0.0
  %1165 = vmatpush1.msra.mxu0 0.0
  %1166 = vmatprep.subr.mxu0 0.0
  %1167 = vmatpush1.msra.mxu0 0.0
  %1168 = vmatprep.subr.mxu0 0.0
  %1169 = vmatpush1.msra.mxu0 0.0
  %1170 = vmatprep.subr.mxu0 0.0
  %1171 = vmatpush1.msra.mxu0 0.0
  %1172 = vmatprep.subr.mxu0 0.0
  %1173 = vmatpush1.msra.mxu0 0.0
  %1174 = vmatprep.subr.mxu0 0.0
  %1175 = vmatpush1.msra.mxu0 0.0
  %1176 = vmatprep.subr.mxu0 0.0
  %1177 = vmatpush1.msra.mxu0 0.0
  %1178 = vmatprep.subr.mxu0 0.0
  %1179 = vmatpush1.msra.mxu0 0.0
  %1180 = vmatprep.subr.mxu0 0.0
  %1181 = vmatpush1.msra.mxu0 0.0
  %1182 = vmatprep.subr.mxu0 0.0
  %1183 = vmatpush1.msra.mxu0 0.0
  %1184 = vmatprep.subr.mxu0 0.0
  %1185 = vmatpush1.msra.mxu0 0.0
  %1186 = vmatprep.subr.mxu0 0.0
  %1187 = vmatpush1.msra.mxu0 0.0
  %1188 = vmatprep.subr.mxu0 0.0
  %1189 = vmatpush1.msra.mxu0 0.0
  %1190 = vmatprep.subr.mxu0 0.0
  %1191 = vmatpush1.msra.mxu0 0.0
  %1192 = vmatprep.subr.mxu0 0.0
  %1193 = vmatpush1.msra.mxu0 0.0
  %1194 = vmatprep.mubr.f32.mxu0 0.0
  %v1195 = vand.u32 %v49, 4294901760
  %1196 = vmatmul.mubr.f32.gmra.mrb[0].mxu0 %v1195
  %v1197 = vpop.f32.mrb[0].mxu0
  %v1198 = vadd.f32 %v1116, %v1197
  %v1199 = vpop.f32.mrb[0].mxu0
  %v1200 = vadd.f32 %v1118, %v1199
  %1201 = vdwg.mxu0
  %v1202 = vmax.f32 %v629, 0.0
  %v1203 = vmax.f32 %v631, 0.0
  %v1204 = vmax.f32 %v1198, 0.0
  %v1205 = vmax.f32 %v1200, 0.0
  %v1206 = vld [vmem:[%s3] sm:$0xff]
  %v1207 = vld [vmem:[%s4] sm:$0x1]
  %v1208 = vlaneseq
  %v1209 = vshrl.u32 %v1208, 7
  %v1210 = vadd.f32 %v1202, %v1203
  %1211 = vadd.xlane.f32.xlu0 %v1210
  %v1212 = vpop.xlane.xlu0 %1211
  %v1213 = vmul.f32 %v1212, 0.00390625
  %v1214 = vmul.f32 %v1213, %v1206
  %v1215 = vrot.slane %v1214, 4
  %v1216 = vadd.f32 %v1214, %v1215
  %v1217 = vrot.slane %v1216, 2
  %v1218 = vadd.f32 %v1216, %v1217
  %v1219 = vrot.slane %v1218, 1
  %v1220 = vadd.f32 %v1218, %v1219
  %v1221 = vadd.f32 %v1220, %v1207
  %vm1222 = vcmp.eq.s32.totalorder %v1209, 0
  %v1223 = vlaneseq
  %v1224 = vshrl.u32 %v1223, 7
  %v1225 = vsub.s32 0, %v1224
  %v1226 = vrot.slane %v1221, %v1225
  %v1227 = vsel %vm1222, %v1226, 0.0
  %v1228 = vadd.f32 %v1204, %v1205
  %1229 = vadd.xlane.f32.xlu0 %v1228
  %v1230 = vpop.xlane.xlu0 %1229
  %v1231 = vmul.f32 %v1230, 0.00390625
  %v1232 = vmul.f32 %v1231, %v1206
  %v1233 = vrot.slane %v1232, 4
  %v1234 = vadd.f32 %v1232, %v1233
  %v1235 = vrot.slane %v1234, 2
  %v1236 = vadd.f32 %v1234, %v1235
  %v1237 = vrot.slane %v1236, 1
  %v1238 = vadd.f32 %v1236, %v1237
  %v1239 = vadd.f32 %v1238, %v1207
  %vm1240 = vcmp.eq.s32.totalorder %v1209, 1
  %v1241 = vlaneseq
  %v1242 = vshrl.u32 %v1241, 7
  %v1243 = vsub.s32 0, %v1242
  %v1244 = vrot.slane %v1239, %v1243
  %v1245 = vsel %vm1240, %v1244, %v1227
  %1246 = vst [vmem:[%s5] sm:$0xff] %v1245
  // Predicated region
  $region22: #{wrapped_model_forward.1} parent=0 // pred_check
    _
  $region23: #{wrapped_model_forward.1} parent=0 // pred_check_branch
    %1248 = sbr.rel (0) target = $region25
  $region24: #{wrapped_model_forward.1} parent=0 // pred_region
    _
  $region25: #{wrapped_model_forward.1} parent=0 // pred_fallthru
    _
  // Predicated region
  $region26: #{wrapped_model_forward.1} parent=0 // pred_check
    _
  $region27: #{wrapped_model_forward.1} parent=0 // pred_check_branch
    %1250 = sbr.rel (0) target = $region29
  $region28: #{wrapped_model_forward.1} parent=0 // pred_region
    _
  $region29: #{wrapped_model_forward.1} parent=0 // pred_fallthru
    _

</llo_original>
